<compile_context>
chip_gen: v5e
topology: v5e:2x2
jax: 0.10.0
libtpu: 0.0.40
codegen_flags: <defaults>
</compile_context>

<pallas_src>
import functools
import numpy as np

import jax
import jax.numpy as jnp
from jax.experimental import pallas as pl
from jax.experimental.pallas import tpu as pltpu


def lstm_kernel(x_tf_ref, w_ihT_ref, w_hhT_ref, w_combT_ref,
                bias_ref, bias_comb_ref, w_linT_ref, b_lin_ref, out_ref,
                *, step_look_back, pred_len, batch_pad, hidden):
    """All refs live in VMEM (no grid, single program).

    x_tf_ref      : (slb*B, I)   teacher inputs, time-major, batch padded to 8
    w_ihT_ref     : (I, 4H)      masked + gate-reordered + transposed
    w_hhT_ref     : (H, 4H)      masked + gate-reordered + transposed
    w_combT_ref   : (H, 4H)      classifier folded into recurrence, transposed
    bias_ref      : (1, 4H)      b_ih + b_hh        (gate-reordered)
    bias_comb_ref : (1, 4H)      bias + b_lin @ (w_ih*m_ih).T
    w_linT_ref    : (H, C)       classifier weight, transposed
    b_lin_ref     : (1, C)
    out_ref       : (P*B, C)     row p*B + b  ->  prediction step p, batch b
    Gate order along the 4H axis is (i, f, o, g).
    """
    B, H, P = batch_pad, hidden, pred_len
    slb = step_look_back

    # ---- constants (loaded / broadcast once, hoisted out of the recurrence)
    w_ihT = w_ihT_ref[...]                                   # (I, 4H)
    w_hhT = w_hhT_ref[...]                                   # (H, 4H)
    w_combT = w_combT_ref[...]                               # (H, 4H)
    w_linT = w_linT_ref[...]                                 # (H, C)
    C = w_linT.shape[1]
    bias_comb_b = jnp.broadcast_to(bias_comb_ref[...], (B, 4 * H))
    b_lin_b = jnp.broadcast_to(b_lin_ref[...], (P * B, C))

    def gate_update(gates, c):
        # gates ordered (i, f, o, g): one contiguous sigmoid over the first 3H
        # lanes, one contiguous tanh over the last H lanes.
        sig = jax.nn.sigmoid(gates[:, :3 * H])
        g_g = jnp.tanh(gates[:, 3 * H:])
        i_g = sig[:, 0:H]
        f_g = sig[:, H:2 * H]
        o_g = sig[:, 2 * H:3 * H]
        c_new = f_g * c + i_g * g_g
        h_new = o_g * jnp.tanh(c_new)
        return h_new, c_new

    # ---- Phase 1: teacher forcing ------------------------------------------
    # All teacher-step input projections as one batched MXU matmul, bias
    # folded in.  (slb*B, I) @ (I, 4H) -> (slb*B, 4H)
    x_proj = jnp.dot(x_tf_ref[...], w_ihT,
                     preferred_element_type=jnp.float32) + bias_ref[...]

    h = jnp.zeros((B, H), jnp.float32)
    c = jnp.zeros((B, H), jnp.float32)
    for s in range(slb):                         # fully unrolled, static slices
        # B is a multiple of 8, so this slice is sublane-tile aligned.
        gates = x_proj[s * B:(s + 1) * B, :] + jnp.dot(
            h, w_hhT, preferred_element_type=jnp.float32)
        h, c = gate_update(gates, c)

    # ---- Phase 2: autoregressive, classifier folded into the recurrence ----
    # Per step critical path: ONE (B,H)@(H,4H) matmul + gate update.
    hs = []
    for _ in range(P):                           # fully unrolled
        gates = jnp.dot(h, w_combT,
                        preferred_element_type=jnp.float32) + bias_comb_b
        h, c = gate_update(gates, c)
        hs.append(h)

    # All P classifier outputs as ONE batched matmul, single store.
    h_all = jnp.concatenate(hs, axis=0)                      # (P*B, H)
    out = jnp.dot(h_all, w_linT, preferred_element_type=jnp.float32) + b_lin_b
    out_ref[...] = out.astype(out_ref.dtype)


def lstm_forward(x, w_ih, w_hh, b_ih, b_hh, m_ih, m_hh, w_lin, b_lin,
                 step_look_back):
    """x: (B, T, I)  ->  outputs: (B, T - step_look_back, C)  (matches torch)."""
    B, T, I = x.shape
    H = w_hh.shape[1]
    C = w_lin.shape[0]
    P = T - step_look_back
    f32 = jnp.float32

    # Pad batch to a sublane multiple so all per-step (B, ·) tiles and the
    # teacher-phase row slices are (8,128)-aligned.
    B_pad = max(8, ((B + 7) // 8) * 8)

    # ---- one-time weight prep (hoisted out of the serial kernel) -----------
    # Gate reorder: PyTorch LSTMCell rows are (i, f, g, o) -> reorder to
    # (i, f, o, g) so the in-kernel nonlinearity splits contiguously.
    perm = np.concatenate([np.arange(0, H), np.arange(H, 2 * H),
                           np.arange(3 * H, 4 * H), np.arange(2 * H, 3 * H)])

    w_ih_m = (w_ih * m_ih).astype(f32)[perm]                 # (4H, I)
    w_hh_m = (w_hh * m_hh).astype(f32)[perm]                 # (4H, H)
    bias = (b_ih + b_hh).astype(f32)[perm].reshape(1, 4 * H)
    w_lin32 = w_lin.astype(f32)                              # (C, H)
    b_lin32 = b_lin.astype(f32).reshape(1, C)

    # Fold the classifier into the autoregressive recurrence:
    #   x_t = h_{t-1} @ w_lin.T + b_lin  =>
    #   gates = h_{t-1} @ (w_ih_m @ w_lin + w_hh_m).T + (bias + b_lin @ w_ih_m.T)
    w_comb = w_ih_m @ w_lin32 + w_hh_m                       # (4H, H)
    bias_comb = bias + b_lin32 @ w_ih_m.T                    # (1, 4H)

    # Pre-transpose all stationary weights once (plain (M,K)@(K,N) in-kernel).
    w_ihT = jnp.asarray(w_ih_m.T)                            # (I, 4H)
    w_hhT = jnp.asarray(w_hh_m.T)                            # (H, 4H)
    w_combT = jnp.asarray(w_comb.T)                          # (H, 4H)
    w_linT = jnp.asarray(w_lin32.T)                          # (H, C)

    # Teacher-forced inputs: time-major, batch padded, flattened so the hoisted
    # projection is one contiguous (slb*B_pad, I) matmul with 8-aligned rows.
    x_tf = jnp.transpose(x[:, :step_look_back, :], (1, 0, 2)).astype(f32)
    x_tf = jnp.pad(x_tf, ((0, 0), (0, B_pad - B), (0, 0)))
    x_tf = x_tf.reshape(step_look_back * B_pad, I)

    kern = functools.partial(
        lstm_kernel, step_look_back=step_look_back, pred_len=P,
        batch_pad=B_pad, hidden=H)
    vmem = pl.BlockSpec(memory_space=pltpu.MemorySpace.VMEM)

    out_flat = pl.pallas_call(
        kern,
        out_shape=jax.ShapeDtypeStruct((P * B_pad, C), jnp.float32),
        in_specs=[vmem] * 8,
        out_specs=vmem,
    )(x_tf, w_ihT, w_hhT, w_combT, bias, bias_comb, w_linT, b_lin32)

    # (P*B_pad, C) -> (B, P, C): drop batch padding, swap time/batch.
    out = out_flat.reshape(P, B_pad, C)[:, :B, :]
    return jnp.transpose(out, (1, 0, 2))


def ref_forward(x, w_ih, w_hh, b_ih, b_hh, m_ih, m_hh, w_lin, b_lin,
                step_look_back):
    """Pure-JAX reference mirroring the PyTorch loop (gate order i,f,g,o)."""
    B, T, I = x.shape
    H = w_hh.shape[1]
    wih = w_ih * m_ih
    whh = w_hh * m_hh
    h = jnp.zeros((B, H), jnp.float32)
    c = jnp.zeros((B, H), jnp.float32)
    outs = []
    for i in range(T):
        xin = x[:, i, :] if i <= step_look_back - 1 else outs[i - 1]
        gates = xin @ wih.T + b_ih + h @ whh.T + b_hh
        ig = jax.nn.sigmoid(gates[:, 0:H])
        fg = jax.nn.sigmoid(gates[:, H:2 * H])
        gg = jnp.tanh(gates[:, 2 * H:3 * H])
        og = jax.nn.sigmoid(gates[:, 3 * H:4 * H])
        c = fg * c + ig * gg
        h = og * jnp.tanh(c)
        outs.append(h @ w_lin.T + b_lin)
    return jnp.stack(outs[step_look_back:], axis=1)


if __name__ == "__main__":
    # Small, self-consistent shapes: input_size == hidden_size == num_classes.
    feat = 16            # selected_feature_num analogue
    H = feat
    B = 4
    T = 10
    step_look_back = 6
    dropout_rate = 0.8   # keep probability (as used by the torch code)

    key = jax.random.PRNGKey(0)
    k = jax.random.split(key, 8)
    bound = 1.0 / np.sqrt(H)

    w_ih = jax.random.uniform(k[0], (4 * H, feat), jnp.float32, -bound, bound)
    w_hh = jax.random.uniform(k[1], (4 * H, H), jnp.float32, -bound, bound)
    b_ih = jax.random.uniform(k[2], (4 * H,), jnp.float32, -bound, bound)
    b_hh = jax.random.uniform(k[3], (4 * H,), jnp.float32, -bound, bound)
    w_lin = jax.random.uniform(k[4], (feat, H), jnp.float32, -bound, bound)
    b_lin = jax.random.uniform(k[5], (feat,), jnp.float32, -bound, bound)

    # train_dropout_type == 1: independent Bernoulli masks / keep_prob
    m_ih = jax.random.bernoulli(k[6], dropout_rate,
                                (4 * H, feat)).astype(jnp.float32) / dropout_rate
    m_hh = jax.random.bernoulli(k[7], dropout_rate,
                                (4 * H, H)).astype(jnp.float32) / dropout_rate

    x = jax.random.normal(jax.random.PRNGKey(1), (B, T, feat), jnp.float32)

    out = lstm_forward(x, w_ih, w_hh, b_ih, b_hh, m_ih, m_hh, w_lin, b_lin,
                       step_look_back)
    out = jax.block_until_ready(out)

    ref = ref_forward(x, w_ih, w_hh, b_ih, b_hh, m_ih, m_hh, w_lin, b_lin,
                      step_look_back)
    assert out.shape == (B, T - step_look_back, feat)
    # Slightly looser than before: the classifier-into-recurrence fold
    # reassociates floating point (h@w_lin.T)@w_ih.T vs h@(w_ih@w_lin).T.
    np.testing.assert_allclose(np.asarray(out), np.asarray(ref),
                               rtol=1e-3, atol=1e-3)
    print("KERNEL_OK")
</pallas_src>

<mosaic_0001>
module attributes {stable_mosaic.version = 11 : i64} {
  func.func @lstm_kernel(%arg0: memref<48x16xf32, #tpu.memory_space<vmem>>, %arg1: memref<16x64xf32, #tpu.memory_space<vmem>>, %arg2: memref<16x64xf32, #tpu.memory_space<vmem>>, %arg3: memref<16x64xf32, #tpu.memory_space<vmem>>, %arg4: memref<1x64xf32, #tpu.memory_space<vmem>>, %arg5: memref<1x64xf32, #tpu.memory_space<vmem>>, %arg6: memref<16x16xf32, #tpu.memory_space<vmem>>, %arg7: memref<1x16xf32, #tpu.memory_space<vmem>>, %arg8: memref<32x16xf32, #tpu.memory_space<vmem>>) attributes {dimension_semantics = [], scalar_prefetch = 0 : i64, scratch_operands = 0 : i64, tpu.core_type = #tpu.core_type<tc>} {
    %c0 = arith.constant 0 : index
    %c0_0 = arith.constant 0 : index
    %0 = vector.load %arg1[%c0, %c0_0] : memref<16x64xf32, #tpu.memory_space<vmem>>, vector<16x64xf32>
    %c0_1 = arith.constant 0 : index
    %c0_2 = arith.constant 0 : index
    %1 = vector.load %arg2[%c0_1, %c0_2] : memref<16x64xf32, #tpu.memory_space<vmem>>, vector<16x64xf32>
    %c0_3 = arith.constant 0 : index
    %c0_4 = arith.constant 0 : index
    %2 = vector.load %arg3[%c0_3, %c0_4] : memref<16x64xf32, #tpu.memory_space<vmem>>, vector<16x64xf32>
    %c0_5 = arith.constant 0 : index
    %c0_6 = arith.constant 0 : index
    %3 = vector.load %arg6[%c0_5, %c0_6] : memref<16x16xf32, #tpu.memory_space<vmem>>, vector<16x16xf32>
    %c0_7 = arith.constant 0 : index
    %c0_8 = arith.constant 0 : index
    %4 = vector.load %arg5[%c0_7, %c0_8] : memref<1x64xf32, #tpu.memory_space<vmem>>, vector<1x64xf32>
    %5 = vector.shape_cast %4 : vector<1x64xf32> to vector<1x64xf32>
    %6 = vector.broadcast %5 : vector<1x64xf32> to vector<8x64xf32>
    %c0_9 = arith.constant 0 : index
    %c0_10 = arith.constant 0 : index
    %7 = vector.load %arg7[%c0_9, %c0_10] : memref<1x16xf32, #tpu.memory_space<vmem>>, vector<1x16xf32>
    %8 = vector.shape_cast %7 : vector<1x16xf32> to vector<1x16xf32>
    %9 = vector.broadcast %8 : vector<1x16xf32> to vector<32x16xf32>
    %c0_11 = arith.constant 0 : index
    %c0_12 = arith.constant 0 : index
    %10 = vector.load %arg0[%c0_11, %c0_12] : memref<48x16xf32, #tpu.memory_space<vmem>>, vector<48x16xf32>
    %cst = arith.constant dense<0.000000e+00> : vector<48x64xf32>
    %11 = tpu.matmul %10, %0, %cst {dimension_numbers = #tpu.dot_dimension_numbers<[1], [0], [0], [1], [0, 0, 1, 1], [], []>} : vector<48x16xf32>, vector<16x64xf32>, vector<48x64xf32> -> vector<48x64xf32>
    %c0_13 = arith.constant 0 : index
    %c0_14 = arith.constant 0 : index
    %12 = vector.load %arg4[%c0_13, %c0_14] : memref<1x64xf32, #tpu.memory_space<vmem>>, vector<1x64xf32>
    %13 = vector.broadcast %12 : vector<1x64xf32> to vector<48x64xf32>
    %14 = arith.addf %11, %13 : vector<48x64xf32>
    %cst_15 = arith.constant 0.000000e+00 : f32
    %15 = vector.broadcast %cst_15 : f32 to vector<8x16xf32>
    %cst_16 = arith.constant 0.000000e+00 : f32
    %16 = vector.broadcast %cst_16 : f32 to vector<8x16xf32>
    %17 = vector.extract_strided_slice %14 {offsets = [0, 0], sizes = [8, 64], strides = [1, 1]} : vector<48x64xf32> to vector<8x64xf32>
    %cst_17 = arith.constant dense<0.000000e+00> : vector<8x64xf32>
    %18 = tpu.matmul %15, %1, %cst_17 {dimension_numbers = #tpu.dot_dimension_numbers<[1], [0], [0], [1], [0, 0, 1, 1], [], []>} : vector<8x16xf32>, vector<16x64xf32>, vector<8x64xf32> -> vector<8x64xf32>
    %19 = arith.addf %17, %18 : vector<8x64xf32>
    %20 = vector.extract_strided_slice %19 {offsets = [0, 0], sizes = [8, 48], strides = [1, 1]} : vector<8x64xf32> to vector<8x48xf32>
    %21 = arith.negf %20 : vector<8x48xf32>
    %22 = math.exp %21 : vector<8x48xf32>
    %cst_18 = arith.constant 1.000000e+00 : f32
    %23 = vector.broadcast %cst_18 : f32 to vector<8x48xf32>
    %24 = arith.addf %23, %22 : vector<8x48xf32>
    %25 = arith.divf %23, %24 : vector<8x48xf32>
    %26 = vector.extract_strided_slice %19 {offsets = [0, 48], sizes = [8, 16], strides = [1, 1]} : vector<8x64xf32> to vector<8x16xf32>
    %27 = math.tanh %26 : vector<8x16xf32>
    %28 = vector.extract_strided_slice %25 {offsets = [0, 0], sizes = [8, 16], strides = [1, 1]} : vector<8x48xf32> to vector<8x16xf32>
    %29 = vector.extract_strided_slice %25 {offsets = [0, 16], sizes = [8, 16], strides = [1, 1]} : vector<8x48xf32> to vector<8x16xf32>
    %30 = vector.extract_strided_slice %25 {offsets = [0, 32], sizes = [8, 16], strides = [1, 1]} : vector<8x48xf32> to vector<8x16xf32>
    %31 = arith.mulf %29, %16 : vector<8x16xf32>
    %32 = arith.mulf %28, %27 : vector<8x16xf32>
    %33 = arith.addf %31, %32 : vector<8x16xf32>
    %34 = math.tanh %33 : vector<8x16xf32>
    %35 = arith.mulf %30, %34 : vector<8x16xf32>
    %36 = vector.extract_strided_slice %14 {offsets = [8, 0], sizes = [8, 64], strides = [1, 1]} : vector<48x64xf32> to vector<8x64xf32>
    %cst_19 = arith.constant dense<0.000000e+00> : vector<8x64xf32>
    %37 = tpu.matmul %35, %1, %cst_19 {dimension_numbers = #tpu.dot_dimension_numbers<[1], [0], [0], [1], [0, 0, 1, 1], [], []>} : vector<8x16xf32>, vector<16x64xf32>, vector<8x64xf32> -> vector<8x64xf32>
    %38 = arith.addf %36, %37 : vector<8x64xf32>
    %39 = vector.extract_strided_slice %38 {offsets = [0, 0], sizes = [8, 48], strides = [1, 1]} : vector<8x64xf32> to vector<8x48xf32>
    %40 = arith.negf %39 : vector<8x48xf32>
    %41 = math.exp %40 : vector<8x48xf32>
    %cst_20 = arith.constant 1.000000e+00 : f32
    %42 = vector.broadcast %cst_20 : f32 to vector<8x48xf32>
    %43 = arith.addf %42, %41 : vector<8x48xf32>
    %44 = arith.divf %42, %43 : vector<8x48xf32>
    %45 = vector.extract_strided_slice %38 {offsets = [0, 48], sizes = [8, 16], strides = [1, 1]} : vector<8x64xf32> to vector<8x16xf32>
    %46 = math.tanh %45 : vector<8x16xf32>
    %47 = vector.extract_strided_slice %44 {offsets = [0, 0], sizes = [8, 16], strides = [1, 1]} : vector<8x48xf32> to vector<8x16xf32>
    %48 = vector.extract_strided_slice %44 {offsets = [0, 16], sizes = [8, 16], strides = [1, 1]} : vector<8x48xf32> to vector<8x16xf32>
    %49 = vector.extract_strided_slice %44 {offsets = [0, 32], sizes = [8, 16], strides = [1, 1]} : vector<8x48xf32> to vector<8x16xf32>
    %50 = arith.mulf %48, %33 : vector<8x16xf32>
    %51 = arith.mulf %47, %46 : vector<8x16xf32>
    %52 = arith.addf %50, %51 : vector<8x16xf32>
    %53 = math.tanh %52 : vector<8x16xf32>
    %54 = arith.mulf %49, %53 : vector<8x16xf32>
    %55 = vector.extract_strided_slice %14 {offsets = [16, 0], sizes = [8, 64], strides = [1, 1]} : vector<48x64xf32> to vector<8x64xf32>
    %cst_21 = arith.constant dense<0.000000e+00> : vector<8x64xf32>
    %56 = tpu.matmul %54, %1, %cst_21 {dimension_numbers = #tpu.dot_dimension_numbers<[1], [0], [0], [1], [0, 0, 1, 1], [], []>} : vector<8x16xf32>, vector<16x64xf32>, vector<8x64xf32> -> vector<8x64xf32>
    %57 = arith.addf %55, %56 : vector<8x64xf32>
    %58 = vector.extract_strided_slice %57 {offsets = [0, 0], sizes = [8, 48], strides = [1, 1]} : vector<8x64xf32> to vector<8x48xf32>
    %59 = arith.negf %58 : vector<8x48xf32>
    %60 = math.exp %59 : vector<8x48xf32>
    %cst_22 = arith.constant 1.000000e+00 : f32
    %61 = vector.broadcast %cst_22 : f32 to vector<8x48xf32>
    %62 = arith.addf %61, %60 : vector<8x48xf32>
    %63 = arith.divf %61, %62 : vector<8x48xf32>
    %64 = vector.extract_strided_slice %57 {offsets = [0, 48], sizes = [8, 16], strides = [1, 1]} : vector<8x64xf32> to vector<8x16xf32>
    %65 = math.tanh %64 : vector<8x16xf32>
    %66 = vector.extract_strided_slice %63 {offsets = [0, 0], sizes = [8, 16], strides = [1, 1]} : vector<8x48xf32> to vector<8x16xf32>
    %67 = vector.extract_strided_slice %63 {offsets = [0, 16], sizes = [8, 16], strides = [1, 1]} : vector<8x48xf32> to vector<8x16xf32>
    %68 = vector.extract_strided_slice %63 {offsets = [0, 32], sizes = [8, 16], strides = [1, 1]} : vector<8x48xf32> to vector<8x16xf32>
    %69 = arith.mulf %67, %52 : vector<8x16xf32>
    %70 = arith.mulf %66, %65 : vector<8x16xf32>
    %71 = arith.addf %69, %70 : vector<8x16xf32>
    %72 = math.tanh %71 : vector<8x16xf32>
    %73 = arith.mulf %68, %72 : vector<8x16xf32>
    %74 = vector.extract_strided_slice %14 {offsets = [24, 0], sizes = [8, 64], strides = [1, 1]} : vector<48x64xf32> to vector<8x64xf32>
    %cst_23 = arith.constant dense<0.000000e+00> : vector<8x64xf32>
    %75 = tpu.matmul %73, %1, %cst_23 {dimension_numbers = #tpu.dot_dimension_numbers<[1], [0], [0], [1], [0, 0, 1, 1], [], []>} : vector<8x16xf32>, vector<16x64xf32>, vector<8x64xf32> -> vector<8x64xf32>
    %76 = arith.addf %74, %75 : vector<8x64xf32>
    %77 = vector.extract_strided_slice %76 {offsets = [0, 0], sizes = [8, 48], strides = [1, 1]} : vector<8x64xf32> to vector<8x48xf32>
    %78 = arith.negf %77 : vector<8x48xf32>
    %79 = math.exp %78 : vector<8x48xf32>
    %cst_24 = arith.constant 1.000000e+00 : f32
    %80 = vector.broadcast %cst_24 : f32 to vector<8x48xf32>
    %81 = arith.addf %80, %79 : vector<8x48xf32>
    %82 = arith.divf %80, %81 : vector<8x48xf32>
    %83 = vector.extract_strided_slice %76 {offsets = [0, 48], sizes = [8, 16], strides = [1, 1]} : vector<8x64xf32> to vector<8x16xf32>
    %84 = math.tanh %83 : vector<8x16xf32>
    %85 = vector.extract_strided_slice %82 {offsets = [0, 0], sizes = [8, 16], strides = [1, 1]} : vector<8x48xf32> to vector<8x16xf32>
    %86 = vector.extract_strided_slice %82 {offsets = [0, 16], sizes = [8, 16], strides = [1, 1]} : vector<8x48xf32> to vector<8x16xf32>
    %87 = vector.extract_strided_slice %82 {offsets = [0, 32], sizes = [8, 16], strides = [1, 1]} : vector<8x48xf32> to vector<8x16xf32>
    %88 = arith.mulf %86, %71 : vector<8x16xf32>
    %89 = arith.mulf %85, %84 : vector<8x16xf32>
    %90 = arith.addf %88, %89 : vector<8x16xf32>
    %91 = math.tanh %90 : vector<8x16xf32>
    %92 = arith.mulf %87, %91 : vector<8x16xf32>
    %93 = vector.extract_strided_slice %14 {offsets = [32, 0], sizes = [8, 64], strides = [1, 1]} : vector<48x64xf32> to vector<8x64xf32>
    %cst_25 = arith.constant dense<0.000000e+00> : vector<8x64xf32>
    %94 = tpu.matmul %92, %1, %cst_25 {dimension_numbers = #tpu.dot_dimension_numbers<[1], [0], [0], [1], [0, 0, 1, 1], [], []>} : vector<8x16xf32>, vector<16x64xf32>, vector<8x64xf32> -> vector<8x64xf32>
    %95 = arith.addf %93, %94 : vector<8x64xf32>
    %96 = vector.extract_strided_slice %95 {offsets = [0, 0], sizes = [8, 48], strides = [1, 1]} : vector<8x64xf32> to vector<8x48xf32>
    %97 = arith.negf %96 : vector<8x48xf32>
    %98 = math.exp %97 : vector<8x48xf32>
    %cst_26 = arith.constant 1.000000e+00 : f32
    %99 = vector.broadcast %cst_26 : f32 to vector<8x48xf32>
    %100 = arith.addf %99, %98 : vector<8x48xf32>
    %101 = arith.divf %99, %100 : vector<8x48xf32>
    %102 = vector.extract_strided_slice %95 {offsets = [0, 48], sizes = [8, 16], strides = [1, 1]} : vector<8x64xf32> to vector<8x16xf32>
    %103 = math.tanh %102 : vector<8x16xf32>
    %104 = vector.extract_strided_slice %101 {offsets = [0, 0], sizes = [8, 16], strides = [1, 1]} : vector<8x48xf32> to vector<8x16xf32>
    %105 = vector.extract_strided_slice %101 {offsets = [0, 16], sizes = [8, 16], strides = [1, 1]} : vector<8x48xf32> to vector<8x16xf32>
    %106 = vector.extract_strided_slice %101 {offsets = [0, 32], sizes = [8, 16], strides = [1, 1]} : vector<8x48xf32> to vector<8x16xf32>
    %107 = arith.mulf %105, %90 : vector<8x16xf32>
    %108 = arith.mulf %104, %103 : vector<8x16xf32>
    %109 = arith.addf %107, %108 : vector<8x16xf32>
    %110 = math.tanh %109 : vector<8x16xf32>
    %111 = arith.mulf %106, %110 : vector<8x16xf32>
    %112 = vector.extract_strided_slice %14 {offsets = [40, 0], sizes = [8, 64], strides = [1, 1]} : vector<48x64xf32> to vector<8x64xf32>
    %cst_27 = arith.constant dense<0.000000e+00> : vector<8x64xf32>
    %113 = tpu.matmul %111, %1, %cst_27 {dimension_numbers = #tpu.dot_dimension_numbers<[1], [0], [0], [1], [0, 0, 1, 1], [], []>} : vector<8x16xf32>, vector<16x64xf32>, vector<8x64xf32> -> vector<8x64xf32>
    %114 = arith.addf %112, %113 : vector<8x64xf32>
    %115 = vector.extract_strided_slice %114 {offsets = [0, 0], sizes = [8, 48], strides = [1, 1]} : vector<8x64xf32> to vector<8x48xf32>
    %116 = arith.negf %115 : vector<8x48xf32>
    %117 = math.exp %116 : vector<8x48xf32>
    %cst_28 = arith.constant 1.000000e+00 : f32
    %118 = vector.broadcast %cst_28 : f32 to vector<8x48xf32>
    %119 = arith.addf %118, %117 : vector<8x48xf32>
    %120 = arith.divf %118, %119 : vector<8x48xf32>
    %121 = vector.extract_strided_slice %114 {offsets = [0, 48], sizes = [8, 16], strides = [1, 1]} : vector<8x64xf32> to vector<8x16xf32>
    %122 = math.tanh %121 : vector<8x16xf32>
    %123 = vector.extract_strided_slice %120 {offsets = [0, 0], sizes = [8, 16], strides = [1, 1]} : vector<8x48xf32> to vector<8x16xf32>
    %124 = vector.extract_strided_slice %120 {offsets = [0, 16], sizes = [8, 16], strides = [1, 1]} : vector<8x48xf32> to vector<8x16xf32>
    %125 = vector.extract_strided_slice %120 {offsets = [0, 32], sizes = [8, 16], strides = [1, 1]} : vector<8x48xf32> to vector<8x16xf32>
    %126 = arith.mulf %124, %109 : vector<8x16xf32>
    %127 = arith.mulf %123, %122 : vector<8x16xf32>
    %128 = arith.addf %126, %127 : vector<8x16xf32>
    %129 = math.tanh %128 : vector<8x16xf32>
    %130 = arith.mulf %125, %129 : vector<8x16xf32>
    %cst_29 = arith.constant dense<0.000000e+00> : vector<8x64xf32>
    %131 = tpu.matmul %130, %2, %cst_29 {dimension_numbers = #tpu.dot_dimension_numbers<[1], [0], [0], [1], [0, 0, 1, 1], [], []>} : vector<8x16xf32>, vector<16x64xf32>, vector<8x64xf32> -> vector<8x64xf32>
    %132 = arith.addf %131, %6 : vector<8x64xf32>
    %133 = vector.extract_strided_slice %132 {offsets = [0, 0], sizes = [8, 48], strides = [1, 1]} : vector<8x64xf32> to vector<8x48xf32>
    %134 = arith.negf %133 : vector<8x48xf32>
    %135 = math.exp %134 : vector<8x48xf32>
    %cst_30 = arith.constant 1.000000e+00 : f32
    %136 = vector.broadcast %cst_30 : f32 to vector<8x48xf32>
    %137 = arith.addf %136, %135 : vector<8x48xf32>
    %138 = arith.divf %136, %137 : vector<8x48xf32>
    %139 = vector.extract_strided_slice %132 {offsets = [0, 48], sizes = [8, 16], strides = [1, 1]} : vector<8x64xf32> to vector<8x16xf32>
    %140 = math.tanh %139 : vector<8x16xf32>
    %141 = vector.extract_strided_slice %138 {offsets = [0, 0], sizes = [8, 16], strides = [1, 1]} : vector<8x48xf32> to vector<8x16xf32>
    %142 = vector.extract_strided_slice %138 {offsets = [0, 16], sizes = [8, 16], strides = [1, 1]} : vector<8x48xf32> to vector<8x16xf32>
    %143 = vector.extract_strided_slice %138 {offsets = [0, 32], sizes = [8, 16], strides = [1, 1]} : vector<8x48xf32> to vector<8x16xf32>
    %144 = arith.mulf %142, %128 : vector<8x16xf32>
    %145 = arith.mulf %141, %140 : vector<8x16xf32>
    %146 = arith.addf %144, %145 : vector<8x16xf32>
    %147 = math.tanh %146 : vector<8x16xf32>
    %148 = arith.mulf %143, %147 : vector<8x16xf32>
    %cst_31 = arith.constant dense<0.000000e+00> : vector<8x64xf32>
    %149 = tpu.matmul %148, %2, %cst_31 {dimension_numbers = #tpu.dot_dimension_numbers<[1], [0], [0], [1], [0, 0, 1, 1], [], []>} : vector<8x16xf32>, vector<16x64xf32>, vector<8x64xf32> -> vector<8x64xf32>
    %150 = arith.addf %149, %6 : vector<8x64xf32>
    %151 = vector.extract_strided_slice %150 {offsets = [0, 0], sizes = [8, 48], strides = [1, 1]} : vector<8x64xf32> to vector<8x48xf32>
    %152 = arith.negf %151 : vector<8x48xf32>
    %153 = math.exp %152 : vector<8x48xf32>
    %cst_32 = arith.constant 1.000000e+00 : f32
    %154 = vector.broadcast %cst_32 : f32 to vector<8x48xf32>
    %155 = arith.addf %154, %153 : vector<8x48xf32>
    %156 = arith.divf %154, %155 : vector<8x48xf32>
    %157 = vector.extract_strided_slice %150 {offsets = [0, 48], sizes = [8, 16], strides = [1, 1]} : vector<8x64xf32> to vector<8x16xf32>
    %158 = math.tanh %157 : vector<8x16xf32>
    %159 = vector.extract_strided_slice %156 {offsets = [0, 0], sizes = [8, 16], strides = [1, 1]} : vector<8x48xf32> to vector<8x16xf32>
    %160 = vector.extract_strided_slice %156 {offsets = [0, 16], sizes = [8, 16], strides = [1, 1]} : vector<8x48xf32> to vector<8x16xf32>
    %161 = vector.extract_strided_slice %156 {offsets = [0, 32], sizes = [8, 16], strides = [1, 1]} : vector<8x48xf32> to vector<8x16xf32>
    %162 = arith.mulf %160, %146 : vector<8x16xf32>
    %163 = arith.mulf %159, %158 : vector<8x16xf32>
    %164 = arith.addf %162, %163 : vector<8x16xf32>
    %165 = math.tanh %164 : vector<8x16xf32>
    %166 = arith.mulf %161, %165 : vector<8x16xf32>
    %cst_33 = arith.constant dense<0.000000e+00> : vector<8x64xf32>
    %167 = tpu.matmul %166, %2, %cst_33 {dimension_numbers = #tpu.dot_dimension_numbers<[1], [0], [0], [1], [0, 0, 1, 1], [], []>} : vector<8x16xf32>, vector<16x64xf32>, vector<8x64xf32> -> vector<8x64xf32>
    %168 = arith.addf %167, %6 : vector<8x64xf32>
    %169 = vector.extract_strided_slice %168 {offsets = [0, 0], sizes = [8, 48], strides = [1, 1]} : vector<8x64xf32> to vector<8x48xf32>
    %170 = arith.negf %169 : vector<8x48xf32>
    %171 = math.exp %170 : vector<8x48xf32>
    %cst_34 = arith.constant 1.000000e+00 : f32
    %172 = vector.broadcast %cst_34 : f32 to vector<8x48xf32>
    %173 = arith.addf %172, %171 : vector<8x48xf32>
    %174 = arith.divf %172, %173 : vector<8x48xf32>
    %175 = vector.extract_strided_slice %168 {offsets = [0, 48], sizes = [8, 16], strides = [1, 1]} : vector<8x64xf32> to vector<8x16xf32>
    %176 = math.tanh %175 : vector<8x16xf32>
    %177 = vector.extract_strided_slice %174 {offsets = [0, 0], sizes = [8, 16], strides = [1, 1]} : vector<8x48xf32> to vector<8x16xf32>
    %178 = vector.extract_strided_slice %174 {offsets = [0, 16], sizes = [8, 16], strides = [1, 1]} : vector<8x48xf32> to vector<8x16xf32>
    %179 = vector.extract_strided_slice %174 {offsets = [0, 32], sizes = [8, 16], strides = [1, 1]} : vector<8x48xf32> to vector<8x16xf32>
    %180 = arith.mulf %178, %164 : vector<8x16xf32>
    %181 = arith.mulf %177, %176 : vector<8x16xf32>
    %182 = arith.addf %180, %181 : vector<8x16xf32>
    %183 = math.tanh %182 : vector<8x16xf32>
    %184 = arith.mulf %179, %183 : vector<8x16xf32>
    %cst_35 = arith.constant dense<0.000000e+00> : vector<8x64xf32>
    %185 = tpu.matmul %184, %2, %cst_35 {dimension_numbers = #tpu.dot_dimension_numbers<[1], [0], [0], [1], [0, 0, 1, 1], [], []>} : vector<8x16xf32>, vector<16x64xf32>, vector<8x64xf32> -> vector<8x64xf32>
    %186 = arith.addf %185, %6 : vector<8x64xf32>
    %187 = vector.extract_strided_slice %186 {offsets = [0, 0], sizes = [8, 48], strides = [1, 1]} : vector<8x64xf32> to vector<8x48xf32>
    %188 = arith.negf %187 : vector<8x48xf32>
    %189 = math.exp %188 : vector<8x48xf32>
    %cst_36 = arith.constant 1.000000e+00 : f32
    %190 = vector.broadcast %cst_36 : f32 to vector<8x48xf32>
    %191 = arith.addf %190, %189 : vector<8x48xf32>
    %192 = arith.divf %190, %191 : vector<8x48xf32>
    %193 = vector.extract_strided_slice %186 {offsets = [0, 48], sizes = [8, 16], strides = [1, 1]} : vector<8x64xf32> to vector<8x16xf32>
    %194 = math.tanh %193 : vector<8x16xf32>
    %195 = vector.extract_strided_slice %192 {offsets = [0, 0], sizes = [8, 16], strides = [1, 1]} : vector<8x48xf32> to vector<8x16xf32>
    %196 = vector.extract_strided_slice %192 {offsets = [0, 16], sizes = [8, 16], strides = [1, 1]} : vector<8x48xf32> to vector<8x16xf32>
    %197 = vector.extract_strided_slice %192 {offsets = [0, 32], sizes = [8, 16], strides = [1, 1]} : vector<8x48xf32> to vector<8x16xf32>
    %198 = arith.mulf %196, %182 : vector<8x16xf32>
    %199 = arith.mulf %195, %194 : vector<8x16xf32>
    %200 = arith.addf %198, %199 : vector<8x16xf32>
    %201 = math.tanh %200 : vector<8x16xf32>
    %202 = arith.mulf %197, %201 : vector<8x16xf32>
    %203 = tpu.concatenate %148, %166, %184, %202 in 0 : vector<8x16xf32>, vector<8x16xf32>, vector<8x16xf32>, vector<8x16xf32> -> vector<32x16xf32>
    %cst_37 = arith.constant dense<0.000000e+00> : vector<32x16xf32>
    %204 = tpu.matmul %203, %3, %cst_37 {dimension_numbers = #tpu.dot_dimension_numbers<[1], [0], [0], [1], [0, 0, 1, 1], [], []>} : vector<32x16xf32>, vector<16x16xf32>, vector<32x16xf32> -> vector<32x16xf32>
    %205 = arith.addf %204, %9 : vector<32x16xf32>
    %c0_38 = arith.constant 0 : index
    %c0_39 = arith.constant 0 : index
    %206 = vector.load %arg8[%c0_38, %c0_39] : memref<32x16xf32, #tpu.memory_space<vmem>>, vector<32x16xf32>
    tpu.vector_store %arg8[%c0_38, %c0_39], %205 {strides = array<i32>} : memref<32x16xf32, #tpu.memory_space<vmem>>, vector<32x16xf32>,
    return
  }
}

</mosaic_0001>

<llo_original>
// kernel: tpu_custom_call.1
$region0: #{tpu_custom_call.1}
  #allocation0 [shape = 'u32[]', space=smem, size = 0x4, offset = 0x4, fixed_abs, tag = 'smem constant byte address 0x4 - core index']
  #allocation1 [shape = 'u32[72,128]{1,0:T(1,128)}', space=vmem, size = 0x9000, scoped, tag = 'internal scratch']
  %s0 = inlined_call_operand.vmem [shape: f32[48,16], index: 0, kind: input, shape index: {}]
  %s1 = inlined_call_operand.vmem [shape: f32[16,64], index: 1, kind: input, shape index: {}]
  %s2 = inlined_call_operand.vmem [shape: f32[16,64], index: 2, kind: input, shape index: {}]
  %s3 = inlined_call_operand.vmem [shape: f32[16,64], index: 3, kind: input, shape index: {}]
  %s4 = inlined_call_operand.vmem [shape: f32[1,64], index: 4, kind: input, shape index: {}]
  %s5 = inlined_call_operand.vmem [shape: f32[1,64], index: 5, kind: input, shape index: {}]
  %s6 = inlined_call_operand.vmem [shape: f32[16,16], index: 6, kind: input, shape index: {}]
  %s7 = inlined_call_operand.vmem [shape: f32[1,16], index: 7, kind: input, shape index: {}]
  %s8 = inlined_call_operand.vmem [shape: f32[32,16], index: 8, kind: output, shape index: {}]
  %s9 = sld [smem:[#allocation0]]
  $region42: #{tpu_custom_call.1} parent=0
    _
  %s11 = ssub.s32 1, %s9
  %s12 = scalar_select 0, %s11, %s9
  // Predicated region
  $region2: #{tpu_custom_call.1} parent=0 // pred_check
    _
  $region3: #{tpu_custom_call.1} parent=0 // pred_check_branch
    %14 = sbr.rel (0) target = $region5
  $region4: #{tpu_custom_call.1} parent=0 // pred_region
    _
  $region5: #{tpu_custom_call.1} parent=0 // pred_fallthru
    _
  // Predicated region
  $region6: #{tpu_custom_call.1} parent=0 // pred_check
    _
  $region7: #{tpu_custom_call.1} parent=0 // pred_check_branch
    %16 = sbr.rel (0) target = $region9
  $region8: #{tpu_custom_call.1} parent=0 // pred_region
    _
  $region9: #{tpu_custom_call.1} parent=0 // pred_fallthru
    _
  // Predicated region
  $region10: #{tpu_custom_call.1} parent=0 // pred_check
    _
  $region11: #{tpu_custom_call.1} parent=0 // pred_check_branch
    %18 = sbr.rel (0) target = $region13
  $region12: #{tpu_custom_call.1} parent=0 // pred_region
    _
  $region13: #{tpu_custom_call.1} parent=0 // pred_fallthru
    _
  // Predicated region
  $region14: #{tpu_custom_call.1} parent=0 // pred_check
    _
  $region15: #{tpu_custom_call.1} parent=0 // pred_check_branch
    %20 = sbr.rel (0) target = $region17
  $region16: #{tpu_custom_call.1} parent=0 // pred_region
    _
  $region17: #{tpu_custom_call.1} parent=0 // pred_fallthru
    _
  // Predicated region
  $region18: #{tpu_custom_call.1} parent=0 // pred_check
    _
  $region19: #{tpu_custom_call.1} parent=0 // pred_check_branch
    %22 = sbr.rel (0) target = $region21
  $region20: #{tpu_custom_call.1} parent=0 // pred_region
    _
  $region21: #{tpu_custom_call.1} parent=0 // pred_fallthru
    _
  // Predicated region
  $region22: #{tpu_custom_call.1} parent=0 // pred_check
    _
  $region23: #{tpu_custom_call.1} parent=0 // pred_check_branch
    %24 = sbr.rel (0) target = $region25
  $region24: #{tpu_custom_call.1} parent=0 // pred_region
    _
  $region25: #{tpu_custom_call.1} parent=0 // pred_fallthru
    _
  // Predicated region
  $region26: #{tpu_custom_call.1} parent=0 // pred_check
    _
  $region27: #{tpu_custom_call.1} parent=0 // pred_check_branch
    %26 = sbr.rel (0) target = $region29
  $region28: #{tpu_custom_call.1} parent=0 // pred_region
    _
  $region29: #{tpu_custom_call.1} parent=0 // pred_fallthru
    _
  // Predicated region
  $region30: #{tpu_custom_call.1} parent=0 // pred_check
    _
  $region31: #{tpu_custom_call.1} parent=0 // pred_check_branch
    %28 = sbr.rel (0) target = $region33
  $region32: #{tpu_custom_call.1} parent=0 // pred_region
    _
  $region33: #{tpu_custom_call.1} parent=0 // pred_fallthru
    _
  %v29 = vld [vmem:[%s1] sm:$0xff]
  %v30 = vld [vmem:[%s1 + $0x8] sm:$0xff]
  %v31 = vld [vmem:[%s2] sm:$0xff]
  %v32 = vld [vmem:[%s2 + $0x8] sm:$0xff]
  %v33 = vld [vmem:[%s3] sm:$0xff]
  %v34 = vld [vmem:[%s3 + $0x8] sm:$0xff]
  %v35 = vld [vmem:[%s6] sm:$0xff]
  %v36 = vld [vmem:[%s6 + $0x8] sm:$0xff]
  %v37 = vld [vmem:[%s5] sm:$0x1]
  %v39 = vperm.slane %v37, 0
  %v41 = vld [vmem:[%s7] sm:$0x1]
  %v43 = vperm.slane %v41, 0
  %v45 = vld [vmem:[%s0] sm:$0xff]
  %v46 = vld [vmem:[%s0 + $0x8] sm:$0xff]
  %v47 = vld [vmem:[%s0 + $0x10] sm:$0xff]
  %v48 = vld [vmem:[%s0 + $0x18] sm:$0xff]
  %v49 = vld [vmem:[%s0 + $0x20] sm:$0xff]
  %v50 = vld [vmem:[%s0 + $0x28] sm:$0xff]
  %v51 = vld [vmem:[%s4] sm:$0x1]
  %v53 = vperm.slane %v51, 0
  %vm55 = vcmask 130048
  %v57 = vsel %vm55, %v45, 0
  %v60 = vsel %vm55, %v46, 0
  %v63 = vsel %vm55, %v47, 0
  %v66 = vsel %vm55, %v48, 0
  %v69 = vsel %vm55, %v49, 0
  %v72 = vsel %vm55, %v50, 0
  %74 = vmatpush.msra.mxu0 0.0
  %75 = vmatpush.msra.mxu0 0.0
  %76 = vmatpush.msra.mxu0 0.0
  %77 = vmatpush.msra.mxu0 0.0
  %78 = vmatpush.msra.mxu0 0.0
  %79 = vmatpush.msra.mxu0 0.0
  %80 = vmatpush.msra.mxu0 0.0
  %81 = vmatpush.msra.mxu0 0.0
  %82 = vmatpush.msra.mxu0 0.0
  %83 = vmatpush.msra.mxu0 0.0
  %84 = vmatpush.msra.mxu0 0.0
  %85 = vmatpush.msra.mxu0 0.0
  %86 = vmatpush.msra.mxu0 0.0
  %87 = vmatpush.msra.mxu0 0.0
  %88 = vmatpush.msra.mxu0 %v30
  %89 = vmatpush.msra.mxu0 %v29
  %90 = vmatmul.f32.gmra.mxu0 %v57
  %v91 = vpop.f32.mrf.mxu0
  %v92 = vadd.f32 %v53, %v91
  %93 = vmatmul.f32.gmra.mxu0 %v60
  %v94 = vpop.f32.mrf.mxu0
  %v95 = vadd.f32 %v53, %v94
  %96 = vmatmul.f32.gmra.mxu0 %v63
  %v97 = vpop.f32.mrf.mxu0
  %v98 = vadd.f32 %v53, %v97
  %99 = vmatmul.f32.gmra.mxu0 %v66
  %v100 = vpop.f32.mrf.mxu0
  %v101 = vadd.f32 %v53, %v100
  %102 = vmatmul.f32.gmra.mxu0 %v69
  %v103 = vpop.f32.mrf.mxu0
  %v104 = vadd.f32 %v53, %v103
  %105 = vmatmul.f32.gmra.mxu0 %v72
  %v106 = vpop.f32.mrf.mxu0
  %v107 = vadd.f32 %v53, %v106
  %108 = vdwg.mxu0
  %v110 = vsel %vm55, 0.0, 0
  %112 = vmatpush.msra.mxu0 0.0
  %113 = vmatpush.msra.mxu0 0.0
  %114 = vmatpush.msra.mxu0 0.0
  %115 = vmatpush.msra.mxu0 0.0
  %116 = vmatpush.msra.mxu0 0.0
  %117 = vmatpush.msra.mxu0 0.0
  %118 = vmatpush.msra.mxu0 0.0
  %119 = vmatpush.msra.mxu0 0.0
  %120 = vmatpush.msra.mxu0 0.0
  %121 = vmatpush.msra.mxu0 0.0
  %122 = vmatpush.msra.mxu0 0.0
  %123 = vmatpush.msra.mxu0 0.0
  %124 = vmatpush.msra.mxu0 0.0
  %125 = vmatpush.msra.mxu0 0.0
  %126 = vmatpush.msra.mxu0 %v32
  %127 = vmatpush.msra.mxu0 %v31
  %128 = vmatmul.f32.gmra.mxu0 %v110
  %v129 = vpop.f32.mrf.mxu0
  %v130 = vadd.f32 0.0, %v129
  %131 = vdwg.mxu0
  %v132 = vadd.f32 %v92, %v130
  %v133 = vxor.u32 %v132, 2147483648
  %v134 = vmul.f32 %v133, 1.442695
  %v135 = vpow.pop %v134
  %v136 = vadd.f32 %v135, 1.0
  %v137 = vrcp.pop %v136
  %v138 = vmul.f32 %v136, %v137
  %v139 = vsub.f32 1.0, %v138
  %v140 = vmul.f32 %v137, %v139
  %v141 = vadd.f32 %v137, %v140
  %vm142 = vweird.f32 %v136
  %vm143 = vweird.f32 %v137
  %vm144 = vmor %vm142, %vm143
  %v145 = vsel %vm144, %v137, %v141
  %v146 = vand.u32 2147483647, %v136
  %vm147 = vcmp.eq.f32.partialorder %v146, 8.507059e+37
  %v148 = vand.u32 %v136, 2147483648
  %v149 = vor.u32 1.1754944e-38, %v148
  %v150 = vsel %vm147, %v149, %v145
  %v151 = vmul.f32 1.0, %v150
  %v152 = vtanh.pop %v132
  %v153 = vmul.f32 %v151, 0.0
  %155 = vrot.lane.b32.xlu0 %v152, 80
  %v156 = vpop.permute.xlu0 %155
  %v158 = vmul.f32 %v151, %v156
  %160 = vrot.lane.b32.xlu0 %v158, 16
  %v161 = vpop.permute.xlu0 %160
  %v163 = vadd.f32 %v153, %v161
  %v164 = vtanh.pop %v163
  %166 = vrot.lane.b32.xlu0 %v164, 16
  %v167 = vpop.permute.xlu0 %166
  %v169 = vmul.f32 %v151, %v167
  %171 = vrot.lane.b32.xlu0 %v169, 96
  %v172 = vpop.permute.xlu0 %171
  %v173 = vsel %vm55, %v172, 0
  %175 = vmatpush.msra.mxu0 0.0
  %176 = vmatpush.msra.mxu0 0.0
  %177 = vmatpush.msra.mxu0 0.0
  %178 = vmatpush.msra.mxu0 0.0
  %179 = vmatpush.msra.mxu0 0.0
  %180 = vmatpush.msra.mxu0 0.0
  %181 = vmatpush.msra.mxu0 0.0
  %182 = vmatpush.msra.mxu0 0.0
  %183 = vmatpush.msra.mxu0 0.0
  %184 = vmatpush.msra.mxu0 0.0
  %185 = vmatpush.msra.mxu0 0.0
  %186 = vmatpush.msra.mxu0 0.0
  %187 = vmatpush.msra.mxu0 0.0
  %188 = vmatpush.msra.mxu0 0.0
  %189 = vmatpush.msra.mxu0 %v32
  %190 = vmatpush.msra.mxu0 %v31
  %191 = vmatmul.f32.gmra.mxu0 %v173
  %v192 = vpop.f32.mrf.mxu0
  %v193 = vadd.f32 0.0, %v192
  %194 = vdwg.mxu0
  %v195 = vadd.f32 %v95, %v193
  %v196 = vxor.u32 %v195, 2147483648
  %v197 = vmul.f32 %v196, 1.442695
  %v198 = vpow.pop %v197
  %v199 = vadd.f32 %v198, 1.0
  %v200 = vrcp.pop %v199
  %v201 = vmul.f32 %v199, %v200
  %v202 = vsub.f32 1.0, %v201
  %v203 = vmul.f32 %v200, %v202
  %v204 = vadd.f32 %v200, %v203
  %vm205 = vweird.f32 %v199
  %vm206 = vweird.f32 %v200
  %vm207 = vmor %vm205, %vm206
  %v208 = vsel %vm207, %v200, %v204
  %v209 = vand.u32 2147483647, %v199
  %vm210 = vcmp.eq.f32.partialorder %v209, 8.507059e+37
  %v211 = vand.u32 %v199, 2147483648
  %v212 = vor.u32 1.1754944e-38, %v211
  %v213 = vsel %vm210, %v212, %v208
  %v214 = vmul.f32 1.0, %v213
  %v215 = vtanh.pop %v195
  %v216 = vmul.f32 %v214, %v163
  %218 = vrot.lane.b32.xlu0 %v215, 80
  %v219 = vpop.permute.xlu0 %218
  %v221 = vmul.f32 %v214, %v219
  %223 = vrot.lane.b32.xlu0 %v221, 16
  %v224 = vpop.permute.xlu0 %223
  %v226 = vadd.f32 %v216, %v224
  %v227 = vtanh.pop %v226
  %229 = vrot.lane.b32.xlu0 %v227, 16
  %v230 = vpop.permute.xlu0 %229
  %v232 = vmul.f32 %v214, %v230
  %234 = vrot.lane.b32.xlu0 %v232, 96
  %v235 = vpop.permute.xlu0 %234
  %v236 = vsel %vm55, %v235, 0
  %238 = vmatpush.msra.mxu0 0.0
  %239 = vmatpush.msra.mxu0 0.0
  %240 = vmatpush.msra.mxu0 0.0
  %241 = vmatpush.msra.mxu0 0.0
  %242 = vmatpush.msra.mxu0 0.0
  %243 = vmatpush.msra.mxu0 0.0
  %244 = vmatpush.msra.mxu0 0.0
  %245 = vmatpush.msra.mxu0 0.0
  %246 = vmatpush.msra.mxu0 0.0
  %247 = vmatpush.msra.mxu0 0.0
  %248 = vmatpush.msra.mxu0 0.0
  %249 = vmatpush.msra.mxu0 0.0
  %250 = vmatpush.msra.mxu0 0.0
  %251 = vmatpush.msra.mxu0 0.0
  %252 = vmatpush.msra.mxu0 %v32
  %253 = vmatpush.msra.mxu0 %v31
  %254 = vmatmul.f32.gmra.mxu0 %v236
  %v255 = vpop.f32.mrf.mxu0
  %v256 = vadd.f32 0.0, %v255
  %257 = vdwg.mxu0
  %v258 = vadd.f32 %v98, %v256
  %v259 = vxor.u32 %v258, 2147483648
  %v260 = vmul.f32 %v259, 1.442695
  %v261 = vpow.pop %v260
  %v262 = vadd.f32 %v261, 1.0
  %v263 = vrcp.pop %v262
  %v264 = vmul.f32 %v262, %v263
  %v265 = vsub.f32 1.0, %v264
  %v266 = vmul.f32 %v263, %v265
  %v267 = vadd.f32 %v263, %v266
  %vm268 = vweird.f32 %v262
  %vm269 = vweird.f32 %v263
  %vm270 = vmor %vm268, %vm269
  %v271 = vsel %vm270, %v263, %v267
  %v272 = vand.u32 2147483647, %v262
  %vm273 = vcmp.eq.f32.partialorder %v272, 8.507059e+37
  %v274 = vand.u32 %v262, 2147483648
  %v275 = vor.u32 1.1754944e-38, %v274
  %v276 = vsel %vm273, %v275, %v271
  %v277 = vmul.f32 1.0, %v276
  %v278 = vtanh.pop %v258
  %v279 = vmul.f32 %v277, %v226
  %281 = vrot.lane.b32.xlu0 %v278, 80
  %v282 = vpop.permute.xlu0 %281
  %v284 = vmul.f32 %v277, %v282
  %286 = vrot.lane.b32.xlu0 %v284, 16
  %v287 = vpop.permute.xlu0 %286
  %v289 = vadd.f32 %v279, %v287
  %v290 = vtanh.pop %v289
  %292 = vrot.lane.b32.xlu0 %v290, 16
  %v293 = vpop.permute.xlu0 %292
  %v295 = vmul.f32 %v277, %v293
  %297 = vrot.lane.b32.xlu0 %v295, 96
  %v298 = vpop.permute.xlu0 %297
  %v299 = vsel %vm55, %v298, 0
  %301 = vmatpush.msra.mxu0 0.0
  %302 = vmatpush.msra.mxu0 0.0
  %303 = vmatpush.msra.mxu0 0.0
  %304 = vmatpush.msra.mxu0 0.0
  %305 = vmatpush.msra.mxu0 0.0
  %306 = vmatpush.msra.mxu0 0.0
  %307 = vmatpush.msra.mxu0 0.0
  %308 = vmatpush.msra.mxu0 0.0
  %309 = vmatpush.msra.mxu0 0.0
  %310 = vmatpush.msra.mxu0 0.0
  %311 = vmatpush.msra.mxu0 0.0
  %312 = vmatpush.msra.mxu0 0.0
  %313 = vmatpush.msra.mxu0 0.0
  %314 = vmatpush.msra.mxu0 0.0
  %315 = vmatpush.msra.mxu0 %v32
  %316 = vmatpush.msra.mxu0 %v31
  %317 = vmatmul.f32.gmra.mxu0 %v299
  %v318 = vpop.f32.mrf.mxu0
  %v319 = vadd.f32 0.0, %v318
  %320 = vdwg.mxu0
  %v321 = vadd.f32 %v101, %v319
  %v322 = vxor.u32 %v321, 2147483648
  %v323 = vmul.f32 %v322, 1.442695
  %v324 = vpow.pop %v323
  %v325 = vadd.f32 %v324, 1.0
  %v326 = vrcp.pop %v325
  %v327 = vmul.f32 %v325, %v326
  %v328 = vsub.f32 1.0, %v327
  %v329 = vmul.f32 %v326, %v328
  %v330 = vadd.f32 %v326, %v329
  %vm331 = vweird.f32 %v325
  %vm332 = vweird.f32 %v326
  %vm333 = vmor %vm331, %vm332
  %v334 = vsel %vm333, %v326, %v330
  %v335 = vand.u32 2147483647, %v325
  %vm336 = vcmp.eq.f32.partialorder %v335, 8.507059e+37
  %v337 = vand.u32 %v325, 2147483648
  %v338 = vor.u32 1.1754944e-38, %v337
  %v339 = vsel %vm336, %v338, %v334
  %v340 = vmul.f32 1.0, %v339
  %v341 = vtanh.pop %v321
  %v342 = vmul.f32 %v340, %v289
  %344 = vrot.lane.b32.xlu0 %v341, 80
  %v345 = vpop.permute.xlu0 %344
  %v347 = vmul.f32 %v340, %v345
  %349 = vrot.lane.b32.xlu0 %v347, 16
  %v350 = vpop.permute.xlu0 %349
  %v352 = vadd.f32 %v342, %v350
  %v353 = vtanh.pop %v352
  %355 = vrot.lane.b32.xlu0 %v353, 16
  %v356 = vpop.permute.xlu0 %355
  %v358 = vmul.f32 %v340, %v356
  %360 = vrot.lane.b32.xlu0 %v358, 96
  %v361 = vpop.permute.xlu0 %360
  %v362 = vsel %vm55, %v361, 0
  %364 = vmatpush.msra.mxu0 0.0
  %365 = vmatpush.msra.mxu0 0.0
  %366 = vmatpush.msra.mxu0 0.0
  %367 = vmatpush.msra.mxu0 0.0
  %368 = vmatpush.msra.mxu0 0.0
  %369 = vmatpush.msra.mxu0 0.0
  %370 = vmatpush.msra.mxu0 0.0
  %371 = vmatpush.msra.mxu0 0.0
  %372 = vmatpush.msra.mxu0 0.0
  %373 = vmatpush.msra.mxu0 0.0
  %374 = vmatpush.msra.mxu0 0.0
  %375 = vmatpush.msra.mxu0 0.0
  %376 = vmatpush.msra.mxu0 0.0
  %377 = vmatpush.msra.mxu0 0.0
  %378 = vmatpush.msra.mxu0 %v32
  %379 = vmatpush.msra.mxu0 %v31
  %380 = vmatmul.f32.gmra.mxu0 %v362
  %v381 = vpop.f32.mrf.mxu0
  %v382 = vadd.f32 0.0, %v381
  %383 = vdwg.mxu0
  %v384 = vadd.f32 %v104, %v382
  %v385 = vxor.u32 %v384, 2147483648
  %v386 = vmul.f32 %v385, 1.442695
  %v387 = vpow.pop %v386
  %v388 = vadd.f32 %v387, 1.0
  %v389 = vrcp.pop %v388
  %v390 = vmul.f32 %v388, %v389
  %v391 = vsub.f32 1.0, %v390
  %v392 = vmul.f32 %v389, %v391
  %v393 = vadd.f32 %v389, %v392
  %vm394 = vweird.f32 %v388
  %vm395 = vweird.f32 %v389
  %vm396 = vmor %vm394, %vm395
  %v397 = vsel %vm396, %v389, %v393
  %v398 = vand.u32 2147483647, %v388
  %vm399 = vcmp.eq.f32.partialorder %v398, 8.507059e+37
  %v400 = vand.u32 %v388, 2147483648
  %v401 = vor.u32 1.1754944e-38, %v400
  %v402 = vsel %vm399, %v401, %v397
  %v403 = vmul.f32 1.0, %v402
  %v404 = vtanh.pop %v384
  %v405 = vmul.f32 %v403, %v352
  %407 = vrot.lane.b32.xlu0 %v404, 80
  %v408 = vpop.permute.xlu0 %407
  %v410 = vmul.f32 %v403, %v408
  %412 = vrot.lane.b32.xlu0 %v410, 16
  %v413 = vpop.permute.xlu0 %412
  %v415 = vadd.f32 %v405, %v413
  %v416 = vtanh.pop %v415
  %418 = vrot.lane.b32.xlu0 %v416, 16
  %v419 = vpop.permute.xlu0 %418
  %v421 = vmul.f32 %v403, %v419
  %423 = vrot.lane.b32.xlu0 %v421, 96
  %v424 = vpop.permute.xlu0 %423
  %v425 = vsel %vm55, %v424, 0
  %427 = vmatpush.msra.mxu0 0.0
  %428 = vmatpush.msra.mxu0 0.0
  %429 = vmatpush.msra.mxu0 0.0
  %430 = vmatpush.msra.mxu0 0.0
  %431 = vmatpush.msra.mxu0 0.0
  %432 = vmatpush.msra.mxu0 0.0
  %433 = vmatpush.msra.mxu0 0.0
  %434 = vmatpush.msra.mxu0 0.0
  %435 = vmatpush.msra.mxu0 0.0
  %436 = vmatpush.msra.mxu0 0.0
  %437 = vmatpush.msra.mxu0 0.0
  %438 = vmatpush.msra.mxu0 0.0
  %439 = vmatpush.msra.mxu0 0.0
  %440 = vmatpush.msra.mxu0 0.0
  %441 = vmatpush.msra.mxu0 %v32
  %442 = vmatpush.msra.mxu0 %v31
  %443 = vmatmul.f32.gmra.mxu0 %v425
  %v444 = vpop.f32.mrf.mxu0
  %v445 = vadd.f32 0.0, %v444
  %446 = vdwg.mxu0
  %v447 = vadd.f32 %v107, %v445
  %v448 = vxor.u32 %v447, 2147483648
  %v449 = vmul.f32 %v448, 1.442695
  %v450 = vpow.pop %v449
  %v451 = vadd.f32 %v450, 1.0
  %v452 = vrcp.pop %v451
  %v453 = vmul.f32 %v451, %v452
  %v454 = vsub.f32 1.0, %v453
  %v455 = vmul.f32 %v452, %v454
  %v456 = vadd.f32 %v452, %v455
  %vm457 = vweird.f32 %v451
  %vm458 = vweird.f32 %v452
  %vm459 = vmor %vm457, %vm458
  %v460 = vsel %vm459, %v452, %v456
  %v461 = vand.u32 2147483647, %v451
  %vm462 = vcmp.eq.f32.partialorder %v461, 8.507059e+37
  %v463 = vand.u32 %v451, 2147483648
  %v464 = vor.u32 1.1754944e-38, %v463
  %v465 = vsel %vm462, %v464, %v460
  %v466 = vmul.f32 1.0, %v465
  %v467 = vtanh.pop %v447
  %v468 = vmul.f32 %v466, %v415
  %470 = vrot.lane.b32.xlu0 %v467, 80
  %v471 = vpop.permute.xlu0 %470
  %v473 = vmul.f32 %v466, %v471
  %475 = vrot.lane.b32.xlu0 %v473, 16
  %v476 = vpop.permute.xlu0 %475
  %v478 = vadd.f32 %v468, %v476
  %v479 = vtanh.pop %v478
  %481 = vrot.lane.b32.xlu0 %v479, 16
  %v482 = vpop.permute.xlu0 %481
  %v484 = vmul.f32 %v466, %v482
  %486 = vrot.lane.b32.xlu0 %v484, 96
  %v487 = vpop.permute.xlu0 %486
  %v488 = vsel %vm55, %v487, 0
  %490 = vmatpush.msra.mxu0 0.0
  %491 = vmatpush.msra.mxu0 0.0
  %492 = vmatpush.msra.mxu0 0.0
  %493 = vmatpush.msra.mxu0 0.0
  %494 = vmatpush.msra.mxu0 0.0
  %495 = vmatpush.msra.mxu0 0.0
  %496 = vmatpush.msra.mxu0 0.0
  %497 = vmatpush.msra.mxu0 0.0
  %498 = vmatpush.msra.mxu0 0.0
  %499 = vmatpush.msra.mxu0 0.0
  %500 = vmatpush.msra.mxu0 0.0
  %501 = vmatpush.msra.mxu0 0.0
  %502 = vmatpush.msra.mxu0 0.0
  %503 = vmatpush.msra.mxu0 0.0
  %504 = vmatpush.msra.mxu0 %v34
  %505 = vmatpush.msra.mxu0 %v33
  %506 = vmatmul.f32.gmra.mxu0 %v488
  %v507 = vpop.f32.mrf.mxu0
  %v508 = vadd.f32 %v39, %v507
  %509 = vdwg.mxu0
  %v510 = vxor.u32 %v508, 2147483648
  %v511 = vmul.f32 %v510, 1.442695
  %v512 = vpow.pop %v511
  %v513 = vadd.f32 %v512, 1.0
  %v514 = vrcp.pop %v513
  %v515 = vmul.f32 %v513, %v514
  %v516 = vsub.f32 1.0, %v515
  %v517 = vmul.f32 %v514, %v516
  %v518 = vadd.f32 %v514, %v517
  %vm519 = vweird.f32 %v513
  %vm520 = vweird.f32 %v514
  %vm521 = vmor %vm519, %vm520
  %v522 = vsel %vm521, %v514, %v518
  %v523 = vand.u32 2147483647, %v513
  %vm524 = vcmp.eq.f32.partialorder %v523, 8.507059e+37
  %v525 = vand.u32 %v513, 2147483648
  %v526 = vor.u32 1.1754944e-38, %v525
  %v527 = vsel %vm524, %v526, %v522
  %v528 = vmul.f32 1.0, %v527
  %v529 = vtanh.pop %v508
  %v530 = vmul.f32 %v528, %v478
  %532 = vrot.lane.b32.xlu0 %v529, 80
  %v533 = vpop.permute.xlu0 %532
  %v535 = vmul.f32 %v528, %v533
  %537 = vrot.lane.b32.xlu0 %v535, 16
  %v538 = vpop.permute.xlu0 %537
  %v540 = vadd.f32 %v530, %v538
  %v541 = vtanh.pop %v540
  %543 = vrot.lane.b32.xlu0 %v541, 16
  %v544 = vpop.permute.xlu0 %543
  %v546 = vmul.f32 %v528, %v544
  %548 = vrot.lane.b32.xlu0 %v546, 96
  %v549 = vpop.permute.xlu0 %548
  %v550 = vsel %vm55, %v549, 0
  %552 = vmatpush.msra.mxu0 0.0
  %553 = vmatpush.msra.mxu0 0.0
  %554 = vmatpush.msra.mxu0 0.0
  %555 = vmatpush.msra.mxu0 0.0
  %556 = vmatpush.msra.mxu0 0.0
  %557 = vmatpush.msra.mxu0 0.0
  %558 = vmatpush.msra.mxu0 0.0
  %559 = vmatpush.msra.mxu0 0.0
  %560 = vmatpush.msra.mxu0 0.0
  %561 = vmatpush.msra.mxu0 0.0
  %562 = vmatpush.msra.mxu0 0.0
  %563 = vmatpush.msra.mxu0 0.0
  %564 = vmatpush.msra.mxu0 0.0
  %565 = vmatpush.msra.mxu0 0.0
  %566 = vmatpush.msra.mxu0 %v34
  %567 = vmatpush.msra.mxu0 %v33
  %568 = vmatmul.f32.gmra.mxu0 %v550
  %v569 = vpop.f32.mrf.mxu0
  %v570 = vadd.f32 %v39, %v569
  %571 = vdwg.mxu0
  %v572 = vxor.u32 %v570, 2147483648
  %v573 = vmul.f32 %v572, 1.442695
  %v574 = vpow.pop %v573
  %v575 = vadd.f32 %v574, 1.0
  %v576 = vrcp.pop %v575
  %v577 = vmul.f32 %v575, %v576
  %v578 = vsub.f32 1.0, %v577
  %v579 = vmul.f32 %v576, %v578
  %v580 = vadd.f32 %v576, %v579
  %vm581 = vweird.f32 %v575
  %vm582 = vweird.f32 %v576
  %vm583 = vmor %vm581, %vm582
  %v584 = vsel %vm583, %v576, %v580
  %v585 = vand.u32 2147483647, %v575
  %vm586 = vcmp.eq.f32.partialorder %v585, 8.507059e+37
  %v587 = vand.u32 %v575, 2147483648
  %v588 = vor.u32 1.1754944e-38, %v587
  %v589 = vsel %vm586, %v588, %v584
  %v590 = vmul.f32 1.0, %v589
  %v591 = vtanh.pop %v570
  %v592 = vmul.f32 %v590, %v540
  %594 = vrot.lane.b32.xlu0 %v591, 80
  %v595 = vpop.permute.xlu0 %594
  %v597 = vmul.f32 %v590, %v595
  %599 = vrot.lane.b32.xlu0 %v597, 16
  %v600 = vpop.permute.xlu0 %599
  %v602 = vadd.f32 %v592, %v600
  %v603 = vtanh.pop %v602
  %605 = vrot.lane.b32.xlu0 %v603, 16
  %v606 = vpop.permute.xlu0 %605
  %v608 = vmul.f32 %v590, %v606
  %610 = vrot.lane.b32.xlu0 %v608, 96
  %v611 = vpop.permute.xlu0 %610
  %v612 = vsel %vm55, %v611, 0
  %614 = vmatpush.msra.mxu0 0.0
  %615 = vmatpush.msra.mxu0 0.0
  %616 = vmatpush.msra.mxu0 0.0
  %617 = vmatpush.msra.mxu0 0.0
  %618 = vmatpush.msra.mxu0 0.0
  %619 = vmatpush.msra.mxu0 0.0
  %620 = vmatpush.msra.mxu0 0.0
  %621 = vmatpush.msra.mxu0 0.0
  %622 = vmatpush.msra.mxu0 0.0
  %623 = vmatpush.msra.mxu0 0.0
  %624 = vmatpush.msra.mxu0 0.0
  %625 = vmatpush.msra.mxu0 0.0
  %626 = vmatpush.msra.mxu0 0.0
  %627 = vmatpush.msra.mxu0 0.0
  %628 = vmatpush.msra.mxu0 %v34
  %629 = vmatpush.msra.mxu0 %v33
  %630 = vmatmul.f32.gmra.mxu0 %v612
  %v631 = vpop.f32.mrf.mxu0
  %v632 = vadd.f32 %v39, %v631
  %633 = vdwg.mxu0
  %v634 = vxor.u32 %v632, 2147483648
  %v635 = vmul.f32 %v634, 1.442695
  %v636 = vpow.pop %v635
  %v637 = vadd.f32 %v636, 1.0
  %v638 = vrcp.pop %v637
  %v639 = vmul.f32 %v637, %v638
  %v640 = vsub.f32 1.0, %v639
  %v641 = vmul.f32 %v638, %v640
  %v642 = vadd.f32 %v638, %v641
  %vm643 = vweird.f32 %v637
  %vm644 = vweird.f32 %v638
  %vm645 = vmor %vm643, %vm644
  %v646 = vsel %vm645, %v638, %v642
  %v647 = vand.u32 2147483647, %v637
  %vm648 = vcmp.eq.f32.partialorder %v647, 8.507059e+37
  %v649 = vand.u32 %v637, 2147483648
  %v650 = vor.u32 1.1754944e-38, %v649
  %v651 = vsel %vm648, %v650, %v646
  %v652 = vmul.f32 1.0, %v651
  %v653 = vtanh.pop %v632
  %v654 = vmul.f32 %v652, %v602
  %656 = vrot.lane.b32.xlu0 %v653, 80
  %v657 = vpop.permute.xlu0 %656
  %v659 = vmul.f32 %v652, %v657
  %661 = vrot.lane.b32.xlu0 %v659, 16
  %v662 = vpop.permute.xlu0 %661
  %v664 = vadd.f32 %v654, %v662
  %v665 = vtanh.pop %v664
  %667 = vrot.lane.b32.xlu0 %v665, 16
  %v668 = vpop.permute.xlu0 %667
  %v670 = vmul.f32 %v652, %v668
  %672 = vrot.lane.b32.xlu0 %v670, 96
  %v673 = vpop.permute.xlu0 %672
  %v674 = vsel %vm55, %v673, 0
  %676 = vmatpush.msra.mxu0 0.0
  %677 = vmatpush.msra.mxu0 0.0
  %678 = vmatpush.msra.mxu0 0.0
  %679 = vmatpush.msra.mxu0 0.0
  %680 = vmatpush.msra.mxu0 0.0
  %681 = vmatpush.msra.mxu0 0.0
  %682 = vmatpush.msra.mxu0 0.0
  %683 = vmatpush.msra.mxu0 0.0
  %684 = vmatpush.msra.mxu0 0.0
  %685 = vmatpush.msra.mxu0 0.0
  %686 = vmatpush.msra.mxu0 0.0
  %687 = vmatpush.msra.mxu0 0.0
  %688 = vmatpush.msra.mxu0 0.0
  %689 = vmatpush.msra.mxu0 0.0
  %690 = vmatpush.msra.mxu0 %v34
  %691 = vmatpush.msra.mxu0 %v33
  %692 = vmatmul.f32.gmra.mxu0 %v674
  %v693 = vpop.f32.mrf.mxu0
  %v694 = vadd.f32 %v39, %v693
  %695 = vdwg.mxu0
  %v696 = vxor.u32 %v694, 2147483648
  %v697 = vmul.f32 %v696, 1.442695
  %v698 = vpow.pop %v697
  %v699 = vadd.f32 %v698, 1.0
  %v700 = vrcp.pop %v699
  %v701 = vmul.f32 %v699, %v700
  %v702 = vsub.f32 1.0, %v701
  %v703 = vmul.f32 %v700, %v702
  %v704 = vadd.f32 %v700, %v703
  %vm705 = vweird.f32 %v699
  %vm706 = vweird.f32 %v700
  %vm707 = vmor %vm705, %vm706
  %v708 = vsel %vm707, %v700, %v704
  %v709 = vand.u32 2147483647, %v699
  %vm710 = vcmp.eq.f32.partialorder %v709, 8.507059e+37
  %v711 = vand.u32 %v699, 2147483648
  %v712 = vor.u32 1.1754944e-38, %v711
  %v713 = vsel %vm710, %v712, %v708
  %v714 = vmul.f32 1.0, %v713
  %v715 = vtanh.pop %v694
  %v716 = vmul.f32 %v714, %v664
  %718 = vrot.lane.b32.xlu0 %v715, 80
  %v719 = vpop.permute.xlu0 %718
  %v721 = vmul.f32 %v714, %v719
  %723 = vrot.lane.b32.xlu0 %v721, 16
  %v724 = vpop.permute.xlu0 %723
  %v726 = vadd.f32 %v716, %v724
  %v727 = vtanh.pop %v726
  %729 = vrot.lane.b32.xlu0 %v727, 16
  %v730 = vpop.permute.xlu0 %729
  %v732 = vmul.f32 %v714, %v730
  %734 = vrot.lane.b32.xlu0 %v732, 96
  %v735 = vpop.permute.xlu0 %734
  %v736 = vsel %vm55, %v735, 0
  %738 = vmatpush.msra.mxu0 0.0
  %739 = vmatpush.msra.mxu0 0.0
  %740 = vmatpush.msra.mxu0 0.0
  %741 = vmatpush.msra.mxu0 0.0
  %742 = vmatpush.msra.mxu0 0.0
  %743 = vmatpush.msra.mxu0 0.0
  %744 = vmatpush.msra.mxu0 0.0
  %745 = vmatpush.msra.mxu0 0.0
  %746 = vmatpush.msra.mxu0 0.0
  %747 = vmatpush.msra.mxu0 0.0
  %748 = vmatpush.msra.mxu0 0.0
  %749 = vmatpush.msra.mxu0 0.0
  %750 = vmatpush.msra.mxu0 0.0
  %751 = vmatpush.msra.mxu0 0.0
  %752 = vmatpush.msra.mxu0 %v36
  %753 = vmatpush.msra.mxu0 %v35
  %754 = vmatmul.f32.gmra.mxu0 %v550
  %v755 = vpop.f32.mrf.mxu0
  %v756 = vadd.f32 %v43, %v755
  %757 = vmatmul.f32.gmra.mxu0 %v612
  %v758 = vpop.f32.mrf.mxu0
  %v759 = vadd.f32 %v43, %v758
  %760 = vmatmul.f32.gmra.mxu0 %v674
  %v761 = vpop.f32.mrf.mxu0
  %v762 = vadd.f32 %v43, %v761
  %763 = vmatmul.f32.gmra.mxu0 %v736
  %v764 = vpop.f32.mrf.mxu0
  %v765 = vadd.f32 %v43, %v764
  %766 = vdwg.mxu0
  %767 = vst.msk [vmem:[%s8] sm:$0xff] %vm55, %v756
  %768 = vst.msk [vmem:[%s8 + $0x8] sm:$0xff] %vm55, %v759
  %769 = vst.msk [vmem:[%s8 + $0x10] sm:$0xff] %vm55, %v762
  %770 = vst.msk [vmem:[%s8 + $0x18] sm:$0xff] %vm55, %v765
  // Predicated region
  $region34: #{tpu_custom_call.1} parent=0 // pred_check
    _
  $region35: #{tpu_custom_call.1} parent=0 // pred_check_branch
    %772 = sbr.rel (0) target = $region37
  $region36: #{tpu_custom_call.1} parent=0 // pred_region
    _
  $region37: #{tpu_custom_call.1} parent=0 // pred_fallthru
    _
  // Predicated region
  $region38: #{tpu_custom_call.1} parent=0 // pred_check
    _
  $region39: #{tpu_custom_call.1} parent=0 // pred_check_branch
    %774 = sbr.rel (0) target = $region41
  $region40: #{tpu_custom_call.1} parent=0 // pred_region
    _
  $region41: #{tpu_custom_call.1} parent=0 // pred_fallthru
    _

</llo_original>
